<compile_context>
chip_gen: v5e
topology: v5e:2x2
jax: 0.10.0
libtpu: 0.0.40
codegen_flags: <defaults>
</compile_context>

<pallas_src>
import jax
import jax.numpy as jnp
from jax.experimental import pallas as pl
from jax.experimental.pallas import tpu as pltpu


def _reasoning_kernel(bike_ref, taxi_ref, w_ref, share_ref, gates_ref):
    # (tm, F) feature tiles in their native dtype.
    bike = bike_ref[...]
    taxi = taxi_ref[...]
    w = w_ref[...]                         # (4, F) f32 sign-folded weight rows
    #   row 0: -w1[:F]   (bike -> logit1)    row 2:  w1[F:]  (taxi -> logit1)
    #   row 1:  w2[F:]   (bike -> logit2)    row 3: -w2[:F]  (taxi -> logit2)

    # Logit reduction in f32 (exact no-op for f32 inputs; accurate accumulation
    # for low-precision inputs).  VPU multiply + XLU lane reduce, no MXU.
    bike_f = bike.astype(jnp.float32)
    taxi_f = taxi.astype(jnp.float32)
    l1 = jnp.sum(bike_f * w[0:1, :] + taxi_f * w[2:3, :], axis=-1, keepdims=True)
    l2 = jnp.sum(bike_f * w[1:2, :] + taxi_f * w[3:4, :], axis=-1, keepdims=True)

    s1 = jax.nn.sigmoid(l1)                # (tm, 1) f32
    s2 = jax.nn.sigmoid(l2)                # (tm, 1) f32

    # share = bike * weight1 + taxi * weight2, blended in the feature dtype
    # (bf16 stays bf16 on the VPU; f32 path is bit-identical to the reference).
    share_ref[...] = (bike * s1.astype(bike.dtype)
                      + taxi * s2.astype(taxi.dtype)).astype(share_ref.dtype)
    # Single packed gate store (one narrow store stream instead of two).
    gates_ref[...] = jnp.concatenate([s1, s2], axis=-1).astype(gates_ref.dtype)


def _choose_tm(M, F, in_bytes, out_bytes, tm_hint=None):
    """Row tile: big enough to amortize per-step overhead, small enough for VMEM
    (v7x budget) and for >=2 grid steps so both v7x TensorCores get work."""
    if M <= 8:
        return M                              # full-array block (equals array dim)

    if tm_hint is not None:
        tm = int(tm_hint)
    else:
        # Target ~3 MiB per input block.
        tm = max(256, (3 * 1024 * 1024) // max(1, F * in_bytes))

    # ~24 MiB double-buffered working set: 2 inputs + share + gates streams.
    per_row = 2 * (2 * F * in_bytes + F * out_bytes + 2 * 4)
    tm = min(tm, max(8, (24 * 1024 * 1024) // max(1, per_row)))

    # Keep multiple grid steps for megacore sharding when M is large enough.
    if M >= 8 * 512:
        min_steps = 8
    elif M >= 4 * 128:
        min_steps = 4
    else:
        min_steps = 2
    tm = min(tm, max(8, pl.cdiv(M, min_steps)))

    # Multiple of 8, never exceeding the largest multiple of 8 that fits in M.
    tm = min(tm, (M // 8) * 8)
    tm = max(8, (tm // 8) * 8)
    return int(tm)


def reasoning_net(bike_feature, taxi_feature, w1, w2, *,
                  out_features, window_size, node_num, tm=None):
    """Pallas implementation of ReasoningNet.forward.

    bike_feature / taxi_feature: (batch, window_size, out_features * node_num)
    w1, w2: (2 * out_features * node_num, 1)
    Returns (share_feature, weight1, weight2) matching the PyTorch module.
    """
    F = out_features * node_num
    B, W, Fin = bike_feature.shape
    assert W == window_size and Fin == F
    M = B * W

    feat_dtype = jnp.result_type(bike_feature.dtype, taxi_feature.dtype)
    gate_dtype = jnp.float32               # gates are tiny; keep full precision

    # Fold the concat/negation structure into one sign-applied (4, F) operand
    # (lane-aligned; the (2F, 1) column layout would waste 127/128 lanes).
    w1f = w1.reshape(2 * F).astype(jnp.float32)
    w2f = w2.reshape(2 * F).astype(jnp.float32)
    wcat = jnp.stack([-w1f[:F],             # bike contribution to logit1
                      w2f[F:],              # bike contribution to logit2
                      w1f[F:],              # taxi contribution to logit1
                      -w2f[:F]], axis=0)    # taxi contribution to logit2

    in_bytes = max(jnp.dtype(bike_feature.dtype).itemsize,
                   jnp.dtype(taxi_feature.dtype).itemsize)
    out_bytes = jnp.dtype(feat_dtype).itemsize
    tm = _choose_tm(M, F, in_bytes, out_bytes, tm_hint=tm)

    bike2d = bike_feature.reshape(M, F)
    taxi2d = taxi_feature.reshape(M, F)

    grid = (pl.cdiv(M, tm),)                # partial tail block; no jnp.pad

    # VMEM limit coupled to the actual (double-buffered) block footprint.
    footprint = (2 * (tm * F * (jnp.dtype(bike_feature.dtype).itemsize
                                + jnp.dtype(taxi_feature.dtype).itemsize)
                      + tm * F * out_bytes + tm * 2 * 4)
                 + 2 * 4 * F * 4)
    vmem_limit = int(min(max(footprint + 4 * 1024 * 1024, 16 * 1024 * 1024),
                         64 * 1024 * 1024))

    cost = pl.CostEstimate(
        flops=int(8 * M * F),
        transcendentals=int(2 * M),
        bytes_accessed=int(M * F * (jnp.dtype(bike_feature.dtype).itemsize
                                    + jnp.dtype(taxi_feature.dtype).itemsize
                                    + out_bytes)
                           + M * 2 * 4 + 4 * F * 4),
    )

    share, gates = pl.pallas_call(
        _reasoning_kernel,
        out_shape=(
            jax.ShapeDtypeStruct((M, F), feat_dtype),
            jax.ShapeDtypeStruct((M, 2), gate_dtype),
        ),
        grid_spec=pltpu.PrefetchScalarGridSpec(
            num_scalar_prefetch=0,
            grid=grid,
            in_specs=[
                pl.BlockSpec((tm, F), lambda i: (i, 0)),
                pl.BlockSpec((tm, F), lambda i: (i, 0)),
                pl.BlockSpec((4, F), lambda i: (0, 0)),
            ],
            out_specs=(
                pl.BlockSpec((tm, F), lambda i: (i, 0)),
                pl.BlockSpec((tm, 2), lambda i: (i, 0)),
            ),
        ),
        compiler_params=pltpu.CompilerParams(
            dimension_semantics=("parallel",),
            vmem_limit_bytes=vmem_limit,
        ),
        cost_estimate=cost,
    )(bike2d, taxi2d, wcat)

    share_feature = share.reshape(B, W, F)
    weight1 = gates[:, 0:1].reshape(B, W, 1)
    weight2 = gates[:, 1:2].reshape(B, W, 1)
    return share_feature, weight1, weight2


def reasoning_net_ref(bike_feature, taxi_feature, w1, w2,
                      *, out_features, window_size, node_num):
    """Pure-JAX reference mirroring the PyTorch forward exactly."""
    F = out_features * node_num
    cat1 = jnp.concatenate([-bike_feature, taxi_feature], axis=-1)
    cat1 = cat1.reshape(-1, 2 * F)
    weight1 = jax.nn.sigmoid(cat1 @ w1).reshape(-1, window_size, 1)
    cat2 = jnp.concatenate([-taxi_feature, bike_feature], axis=-1)
    cat2 = cat2.reshape(-1, 2 * F)
    weight2 = jax.nn.sigmoid(cat2 @ w2).reshape(-1, window_size, 1)
    share = bike_feature * weight1 + taxi_feature * weight2
    return share, weight1, weight2


if __name__ == "__main__":
    # Small but representative shapes: F = 128 (lane-dense tiles),
    # M = 240 rows -> adaptive tm gives a 2-step parallel grid.
    out_features = 4
    node_num = 32
    window_size = 8
    batch = 30
    F = out_features * node_num            # 128

    key = jax.random.PRNGKey(0)
    k_bike, k_taxi, k_w1, k_w2 = jax.random.split(key, 4)

    bike_feature = jax.random.normal(k_bike, (batch, window_size, F), jnp.float32)
    taxi_feature = jax.random.normal(k_taxi, (batch, window_size, F), jnp.float32)
    # parameters: torch.randn(2*out_features*node_num, 1) -> standard normal
    w1 = jax.random.normal(k_w1, (2 * F, 1), jnp.float32)
    w2 = jax.random.normal(k_w2, (2 * F, 1), jnp.float32)

    share, wt1, wt2 = reasoning_net(
        bike_feature, taxi_feature, w1, w2,
        out_features=out_features, window_size=window_size, node_num=node_num)
    jax.block_until_ready((share, wt1, wt2))

    share_r, wt1_r, wt2_r = reasoning_net_ref(
        bike_feature, taxi_feature, w1, w2,
        out_features=out_features, window_size=window_size, node_num=node_num)

    assert share.shape == (batch, window_size, F)
    assert wt1.shape == (batch, window_size, 1)
    assert wt2.shape == (batch, window_size, 1)
    assert jnp.allclose(share, share_r, atol=1e-4, rtol=1e-4)
    assert jnp.allclose(wt1, wt1_r, atol=1e-4, rtol=1e-4)
    assert jnp.allclose(wt2, wt2_r, atol=1e-4, rtol=1e-4)

    print("KERNEL_OK")
</pallas_src>

<mosaic_0001>
module attributes {stable_mosaic.version = 11 : i64} {
  func.func @_reasoning_kernel(%arg0: i32, %arg1: memref<120x128xf32, #tpu.memory_space<vmem>>, %arg2: memref<120x128xf32, #tpu.memory_space<vmem>>, %arg3: memref<4x128xf32, #tpu.memory_space<vmem>>, %arg4: memref<120x128xf32, #tpu.memory_space<vmem>>, %arg5: memref<120x2xf32, #tpu.memory_space<vmem>>) attributes {dimension_semantics = [#tpu.dimension_semantics<parallel>], iteration_bounds = array<i64: 2>, scalar_prefetch = 0 : i64, scratch_operands = 0 : i64, tpu.core_type = #tpu.core_type<tc>, window_params = [{transform_indices = @transform_0, window_bounds = array<i64: 120, 128>}, {transform_indices = @transform_1, window_bounds = array<i64: 120, 128>}, {pipeline_mode = #tpu.pipeline_mode<synchronous>, transform_indices = @transform_2, window_bounds = array<i64: 4, 128>}, {transform_indices = @transform_3, window_bounds = array<i64: 120, 128>}, {transform_indices = @transform_4, window_bounds = array<i64: 120, 2>}]} {
    %c0 = arith.constant 0 : index
    %c0_0 = arith.constant 0 : index
    %0 = vector.load %arg1[%c0, %c0_0] : memref<120x128xf32, #tpu.memory_space<vmem>>, vector<120x128xf32>
    %c0_1 = arith.constant 0 : index
    %c0_2 = arith.constant 0 : index
    %1 = vector.load %arg2[%c0_1, %c0_2] : memref<120x128xf32, #tpu.memory_space<vmem>>, vector<120x128xf32>
    %c0_3 = arith.constant 0 : index
    %c0_4 = arith.constant 0 : index
    %2 = vector.load %arg3[%c0_3, %c0_4] : memref<4x128xf32, #tpu.memory_space<vmem>>, vector<4x128xf32>
    %3 = vector.extract_strided_slice %2 {offsets = [0, 0], sizes = [1, 128], strides = [1, 1]} : vector<4x128xf32> to vector<1x128xf32>
    %4 = vector.broadcast %3 : vector<1x128xf32> to vector<120x128xf32>
    %5 = arith.mulf %0, %4 : vector<120x128xf32>
    %6 = vector.extract_strided_slice %2 {offsets = [2, 0], sizes = [1, 128], strides = [1, 1]} : vector<4x128xf32> to vector<1x128xf32>
    %7 = vector.broadcast %6 : vector<1x128xf32> to vector<120x128xf32>
    %8 = arith.mulf %1, %7 : vector<120x128xf32>
    %9 = arith.addf %5, %8 : vector<120x128xf32>
    %cst = arith.constant dense<0.000000e+00> : vector<120xf32>
    %10 = vector.multi_reduction <add>, %9, %cst [1] : vector<120x128xf32> to vector<120xf32>
    %11 = vector.shape_cast %10 : vector<120xf32> to vector<120x1xf32>
    %12 = vector.extract_strided_slice %2 {offsets = [1, 0], sizes = [1, 128], strides = [1, 1]} : vector<4x128xf32> to vector<1x128xf32>
    %13 = vector.broadcast %12 : vector<1x128xf32> to vector<120x128xf32>
    %14 = arith.mulf %0, %13 : vector<120x128xf32>
    %15 = vector.extract_strided_slice %2 {offsets = [3, 0], sizes = [1, 128], strides = [1, 1]} : vector<4x128xf32> to vector<1x128xf32>
    %16 = vector.broadcast %15 : vector<1x128xf32> to vector<120x128xf32>
    %17 = arith.mulf %1, %16 : vector<120x128xf32>
    %18 = arith.addf %14, %17 : vector<120x128xf32>
    %cst_5 = arith.constant dense<0.000000e+00> : vector<120xf32>
    %19 = vector.multi_reduction <add>, %18, %cst_5 [1] : vector<120x128xf32> to vector<120xf32>
    %20 = vector.shape_cast %19 : vector<120xf32> to vector<120x1xf32>
    %21 = arith.negf %11 : vector<120x1xf32>
    %22 = math.exp %21 : vector<120x1xf32>
    %cst_6 = arith.constant 1.000000e+00 : f32
    %23 = vector.broadcast %cst_6 : f32 to vector<120x1xf32>
    %24 = arith.addf %23, %22 : vector<120x1xf32>
    %25 = arith.divf %23, %24 : vector<120x1xf32>
    %26 = arith.negf %20 : vector<120x1xf32>
    %27 = math.exp %26 : vector<120x1xf32>
    %cst_7 = arith.constant 1.000000e+00 : f32
    %28 = vector.broadcast %cst_7 : f32 to vector<120x1xf32>
    %29 = arith.addf %28, %27 : vector<120x1xf32>
    %30 = arith.divf %28, %29 : vector<120x1xf32>
    %31 = vector.broadcast %25 : vector<120x1xf32> to vector<120x128xf32>
    %32 = arith.mulf %0, %31 : vector<120x128xf32>
    %33 = vector.broadcast %30 : vector<120x1xf32> to vector<120x128xf32>
    %34 = arith.mulf %1, %33 : vector<120x128xf32>
    %35 = arith.addf %32, %34 : vector<120x128xf32>
    %c0_8 = arith.constant 0 : index
    %c0_9 = arith.constant 0 : index
    %36 = vector.load %arg4[%c0_8, %c0_9] : memref<120x128xf32, #tpu.memory_space<vmem>>, vector<120x128xf32>
    tpu.vector_store %arg4[%c0_8, %c0_9], %35 {strides = array<i32>} : memref<120x128xf32, #tpu.memory_space<vmem>>, vector<120x128xf32>,
    %37 = tpu.concatenate %25, %30 in 1 : vector<120x1xf32>, vector<120x1xf32> -> vector<120x2xf32>
    %c0_10 = arith.constant 0 : index
    %c0_11 = arith.constant 0 : index
    %38 = vector.load %arg5[%c0_10, %c0_11] : memref<120x2xf32, #tpu.memory_space<vmem>>, vector<120x2xf32>
    tpu.vector_store %arg5[%c0_10, %c0_11], %37 {strides = array<i32>} : memref<120x2xf32, #tpu.memory_space<vmem>>, vector<120x2xf32>,
    return
  }
  func.func @transform_0(%arg0: i32) -> (i32, i32) {
    %c0_i32 = arith.constant 0 : i32
    %c0_i32_0 = arith.constant 0 : i32
    return %arg0, %c0_i32 : i32, i32
  }
  func.func @transform_1(%arg0: i32) -> (i32, i32) {
    %c0_i32 = arith.constant 0 : i32
    %c0_i32_0 = arith.constant 0 : i32
    return %arg0, %c0_i32 : i32, i32
  }
  func.func @transform_2(%arg0: i32) -> (i32, i32) {
    %c0_i32 = arith.constant 0 : i32
    %c0_i32_0 = arith.constant 0 : i32
    %c0_i32_1 = arith.constant 0 : i32
    return %c0_i32, %c0_i32_0 : i32, i32
  }
  func.func @transform_3(%arg0: i32) -> (i32, i32) {
    %c0_i32 = arith.constant 0 : i32
    %c0_i32_0 = arith.constant 0 : i32
    return %arg0, %c0_i32 : i32, i32
  }
  func.func @transform_4(%arg0: i32) -> (i32, i32) {
    %c0_i32 = arith.constant 0 : i32
    %c0_i32_0 = arith.constant 0 : i32
    return %arg0, %c0_i32 : i32, i32
  }
}

</mosaic_0001>

<llo_original>
// kernel: tpu_custom_call.1
$region0: #{tpu_custom_call.1}
  #allocation0 [shape = 'u32[]', space=smem, size = 0x4, offset = 0x4, fixed_abs, tag = 'smem constant byte address 0x4 - core index']
  #allocation1 [shape = 'u32[72,128]{1,0:T(1,128)}', space=vmem, size = 0x9000, scoped, tag = 'internal scratch']
  %s0 = inlined_call_operand.hbm [shape: f32[240,128], index: 0, kind: input, shape index: {}]
  %s1 = inlined_call_operand.hbm [shape: f32[240,128], index: 1, kind: input, shape index: {}]
  %s2 = inlined_call_operand.hbm [shape: f32[4,128], index: 2, kind: input, shape index: {}]
  %s3 = inlined_call_operand.hbm [shape: f32[240,128], index: 3, kind: output, shape index: {0}]
  %s4 = inlined_call_operand.vmem [shape: f32[240,2], index: 4, kind: output, shape index: {1}]
  %5 = xla_tuple %s3, %s4
  %s6 = sld [smem:[#allocation0]]
  $region65: #{tpu_custom_call.1} parent=0
    _
  %s8 = ssub.s32 1, %s6
  %s9 = scalar_select 0, %s8, %s6
  $region1: #{tpu_custom_call.1} parent=0
    #allocation2 [shape = 'u8[122880]{0}', space=vmem, size = 0x1e000, scoped, tag = 'input window, operand 0']
    #allocation3 [shape = 's32[2]{0}', space=sflag, size = 0x8, scoped, tag = 'scoped memory for tpu_custom_call.1']
    #allocation4 [shape = 's32[2]{0}', space=sflag, size = 0x8, scoped, tag = 'scoped memory for tpu_custom_call.1']
    #allocation5 [shape = 'u8[122880]{0}', space=vmem, size = 0x1e000, scoped, tag = 'input window, operand 1']
    #allocation6 [shape = 's32[2]{0}', space=sflag, size = 0x8, scoped, tag = 'scoped memory for tpu_custom_call.1']
    #allocation7 [shape = 'u8[2048]{0}', space=vmem, size = 0x800, scoped, tag = 'input window, operand 2, single buffered']
    #allocation8 [shape = 'u8[122880]{0}', space=vmem, size = 0x1e000, scoped, tag = 'output window, operand 0']
    %10 = vsyncpa [#allocation3], 0
    %s11 = scalar_lea.sflag [#allocation3], 1
    %12 = vsyncpa %s11, 0
    %13 = vsyncpa [#allocation6], 0
    %s14 = scalar_lea.sflag [#allocation6], 1
    %15 = vsyncpa %s14, 0
    %16 = vsyncpa [#allocation4], 0
    %s17 = scalar_lea.sflag [#allocation4], 1
    %18 = vsyncpa %s17, 0
    loop: start=0, step=1, limit=4
    $region2: #{tpu_custom_call.1} parent=1 // loop_pre_header
      _
    $region3: #{tpu_custom_call.1} parent=1 // loop_header
      %s20 = sphi 0, %s24
      %p21 = scmp.ge.s32.totalorder %s20, 4
      %s30 = sphi 0, %s32
      %s33 = sphi 0, %s30
      %s34 = sphi 0, %s33
      %s50 = sphi 0, %s34
      %s56 = sphi 0, %s58
      %s59 = sphi 0, %s56
      %s60 = sphi 0, %s59
      %s76 = sphi 0, %s60
      %s80 = sphi 0, %s80
      %s82 = sphi 0, %s80
      %s83 = sphi 0, %s82
      %s97 = sphi 0, %s83
      %s103 = sphi 0, %s105
      %s106 = sphi 0, %s103
      %s107 = sphi 0, %s106
      %s123 = sphi 0, %s107
      %s129 = sphi 0, %s131
      %s132 = sphi 0, %s129
      %s133 = sphi 0, %s132
      %s149 = sphi 0, %s133
    $region4: #{tpu_custom_call.1} parent=1 // loop_header_branch
      %23 = sbr.rel (%p21) target = $region8
    $region5: #{tpu_custom_call.1} parent=1 // loop_body
      %s25 = ssub.s32 %s20, 1
      %s26 = ssub.s32 %s20, 2
      %s27 = sadd.s32 %s20, 1
      %s28 = ssub.s32 %s20, %s27
      %p29 = scmp.eq.s32.totalorder %s28, 0
      %s31 = sadd.s32 %s30, 1
      %s32 = scalar_select %p29, %s30, %s31
      %p35 = pneg %p29
      %p36 = scmp.eq.s32.totalorder %s20, 1
      %p37 = por %p35, %p36
      %p38 = scmp.ne.s32.totalorder %s30, %s33
      %p39 = scmp.eq.s32.totalorder %s20, 0
      %p40 = por %p38, %p39
      %p41 = scmp.ne.s32.totalorder %s30, %s33
      %p42 = scmp.eq.s32.totalorder %s25, 1
      %p43 = por %p41, %p42
      %p44 = scmp.ne.s32.totalorder %s33, %s34
      %p45 = scmp.eq.s32.totalorder %s25, 0
      %p46 = por %p44, %p45
      %p47 = scmp.ne.s32.totalorder %s33, %s34
      %p48 = scmp.eq.s32.totalorder %s26, 1
      %p49 = por %p47, %p48
      %p51 = scmp.ne.s32.totalorder %s34, %s50
      %p52 = scmp.eq.s32.totalorder %s26, 0
      %p53 = por %p51, %p52
      %s54 = ssub.s32 %s20, %s27
      %p55 = scmp.eq.s32.totalorder %s54, 0
      %s57 = sadd.s32 %s56, 1
      %s58 = scalar_select %p55, %s56, %s57
      %p61 = pneg %p55
      %p62 = scmp.eq.s32.totalorder %s20, 1
      %p63 = por %p61, %p62
      %p64 = scmp.ne.s32.totalorder %s56, %s59
      %p65 = scmp.eq.s32.totalorder %s20, 0
      %p66 = por %p64, %p65
      %p67 = scmp.ne.s32.totalorder %s56, %s59
      %p68 = scmp.eq.s32.totalorder %s25, 1
      %p69 = por %p67, %p68
      %p70 = scmp.ne.s32.totalorder %s59, %s60
      %p71 = scmp.eq.s32.totalorder %s25, 0
      %p72 = por %p70, %p71
      %p73 = scmp.ne.s32.totalorder %s59, %s60
      %p74 = scmp.eq.s32.totalorder %s26, 1
      %p75 = por %p73, %p74
      %p77 = scmp.ne.s32.totalorder %s60, %s76
      %p78 = scmp.eq.s32.totalorder %s26, 0
      %p79 = por %p77, %p78
      %s81 = sadd.s32 %s80, 1
      %p84 = scmp.eq.s32.totalorder %s20, 1
      %p85 = scmp.ne.s32.totalorder %s80, %s82
      %p86 = scmp.eq.s32.totalorder %s20, 0
      %p87 = por %p85, %p86
      %p88 = scmp.ne.s32.totalorder %s80, %s82
      %p89 = scmp.eq.s32.totalorder %s25, 1
      %p90 = por %p88, %p89
      %p91 = scmp.ne.s32.totalorder %s82, %s83
      %p92 = scmp.eq.s32.totalorder %s25, 0
      %p93 = por %p91, %p92
      %p94 = scmp.ne.s32.totalorder %s82, %s83
      %p95 = scmp.eq.s32.totalorder %s26, 1
      %p96 = por %p94, %p95
      %p98 = scmp.ne.s32.totalorder %s83, %s97
      %p99 = scmp.eq.s32.totalorder %s26, 0
      %p100 = por %p98, %p99
      %s101 = ssub.s32 %s20, %s27
      %p102 = scmp.eq.s32.totalorder %s101, 0
      %s104 = sadd.s32 %s103, 1
      %s105 = scalar_select %p102, %s103, %s104
      %p108 = pneg %p102
      %p109 = scmp.eq.s32.totalorder %s20, 1
      %p110 = por %p108, %p109
      %p111 = scmp.ne.s32.totalorder %s103, %s106
      %p112 = scmp.eq.s32.totalorder %s20, 0
      %p113 = por %p111, %p112
      %p114 = scmp.ne.s32.totalorder %s103, %s106
      %p115 = scmp.eq.s32.totalorder %s25, 1
      %p116 = por %p114, %p115
      %p117 = scmp.ne.s32.totalorder %s106, %s107
      %p118 = scmp.eq.s32.totalorder %s25, 0
      %p119 = por %p117, %p118
      %p120 = scmp.ne.s32.totalorder %s106, %s107
      %p121 = scmp.eq.s32.totalorder %s26, 1
      %p122 = por %p120, %p121
      %p124 = scmp.ne.s32.totalorder %s107, %s123
      %p125 = scmp.eq.s32.totalorder %s26, 0
      %p126 = por %p124, %p125
      %s127 = ssub.s32 %s20, %s27
      %p128 = scmp.eq.s32.totalorder %s127, 0
      %s130 = sadd.s32 %s129, 1
      %s131 = scalar_select %p128, %s129, %s130
      %p134 = pneg %p128
      %p135 = scmp.eq.s32.totalorder %s20, 1
      %p136 = por %p134, %p135
      %p137 = scmp.ne.s32.totalorder %s129, %s132
      %p138 = scmp.eq.s32.totalorder %s20, 0
      %p139 = por %p137, %p138
      %p140 = scmp.ne.s32.totalorder %s129, %s132
      %p141 = scmp.eq.s32.totalorder %s25, 1
      %p142 = por %p140, %p141
      %p143 = scmp.ne.s32.totalorder %s132, %s133
      %p144 = scmp.eq.s32.totalorder %s25, 0
      %p145 = por %p143, %p144
      %p146 = scmp.ne.s32.totalorder %s132, %s133
      %p147 = scmp.eq.s32.totalorder %s26, 1
      %p148 = por %p146, %p147
      %p150 = scmp.ne.s32.totalorder %s133, %s149
      %p151 = scmp.eq.s32.totalorder %s26, 0
      %p152 = por %p150, %p151
      %p153 = scmp.le.s32.totalorder 1, %s20
      %p154 = scmp.lt.s32.totalorder %s20, 3
      %p155 = pnand %p153, %p154
      %p156 = pneg %p155
      // Predicated region
      $region9: #{tpu_custom_call.1} parent=5 // pred_check
        _
      $region10: #{tpu_custom_call.1} parent=5 // pred_check_branch
        %158 = sbr.rel (%p155) target = $region12
      $region11: #{tpu_custom_call.1} parent=5 // pred_region
        %s159 = ssub.s32 %s20, 1
        // Predicated region
        $region13: #{tpu_custom_call.1} parent=11 // pred_check
          %p160 = pneg %p93
        $region14: #{tpu_custom_call.1} parent=11 // pred_check_branch
          %162 = sbr.rel (%p160) target = $region16
        $region15: #{tpu_custom_call.1} parent=11 // pred_region
          %164 = vsyncadd [#allocation6], 0
          %s166 = sshll.u32 %s2, 4
          %s167 = int_to_ptr.hbm [resolvable:$true] %s166
          %s168 = sshll.u32 [#allocation7], 4
          %s169 = int_to_ptr.vmem [resolvable:$true] %s168
          %171 = dma.hbm_to_vmem [thread:$0]  %s167, 64, %s169, [#allocation6]
        $region16: #{tpu_custom_call.1} parent=11 // pred_fallthru
          _
      $region12: #{tpu_custom_call.1} parent=5 // pred_fallthru
        _
      %p172 = scmp.lt.s32.totalorder %s20, 2
      // Predicated region
      $region17: #{tpu_custom_call.1} parent=5 // pred_check
        %p173 = pneg %p172
      $region18: #{tpu_custom_call.1} parent=5 // pred_check_branch
        %175 = sbr.rel (%p173) target = $region20
      $region19: #{tpu_custom_call.1} parent=5 // pred_region
        // Predicated region
        $region21: #{tpu_custom_call.1} parent=19 // pred_check
          %p176 = pneg %p40
        $region22: #{tpu_custom_call.1} parent=19 // pred_check_branch
          %178 = sbr.rel (%p176) target = $region24
        $region23: #{tpu_custom_call.1} parent=19 // pred_region
          %s179 = sand.u32 %s30, 1
          %s180 = scalar_lea.sflag [#allocation3], %s179
          %s181 = sand.u32 %s30, 1
          %s182 = smul.addr %s181, 120
          %s183 = scalar_lea.vmem [#allocation2], %s182
          %s184 = smul.u32 15, %s20
          %186 = vsyncadd %s180, 0
          %s187 = smul.addr %s184, 8
          %s188 = scalar_lea.hbm %s0, %s187
          %s189 = sshll.u32 %s188, 4
          %s190 = int_to_ptr.hbm [resolvable:$true] %s189
          %s191 = sshll.u32 %s183, 4
          %s192 = int_to_ptr.vmem [resolvable:$true] %s191
          %197 = dma.hbm_to_vmem [thread:$0]  %s190, 1920, %s192, %s180, 128, 128, 8
        $region24: #{tpu_custom_call.1} parent=19 // pred_fallthru
          _
        // Predicated region
        $region25: #{tpu_custom_call.1} parent=19 // pred_check
          %p198 = pneg %p66
        $region26: #{tpu_custom_call.1} parent=19 // pred_check_branch
          %200 = sbr.rel (%p198) target = $region28
        $region27: #{tpu_custom_call.1} parent=19 // pred_region
          %s201 = sand.u32 %s20, 1
          %s202 = scalar_lea.sflag [#allocation6], %s201
          %s203 = sand.u32 %s56, 1
          %s204 = smul.addr %s203, 120
          %s205 = scalar_lea.vmem [#allocation5], %s204
          %s206 = smul.u32 15, %s20
          %208 = vsyncadd %s202, 0
          %s209 = smul.addr %s206, 8
          %s210 = scalar_lea.hbm %s1, %s209
          %s211 = sshll.u32 %s210, 4
          %s212 = int_to_ptr.hbm [resolvable:$true] %s211
          %s213 = sshll.u32 %s205, 4
          %s214 = int_to_ptr.vmem [resolvable:$true] %s213
          %219 = dma.hbm_to_vmem [thread:$0]  %s212, 1920, %s214, %s202, 128, 128, 8
        $region28: #{tpu_custom_call.1} parent=19 // pred_fallthru
          _
      $region20: #{tpu_custom_call.1} parent=5 // pred_fallthru
        _
      %p220 = scmp.le.s32.totalorder 1, %s20
      %p221 = scmp.lt.s32.totalorder %s20, 3
      %p222 = pnand %p220, %p221
      %p223 = pneg %p222
      // Predicated region
      $region29: #{tpu_custom_call.1} parent=5 // pred_check
        _
      $region30: #{tpu_custom_call.1} parent=5 // pred_check_branch
        %225 = sbr.rel (%p222) target = $region32
      $region31: #{tpu_custom_call.1} parent=5 // pred_region
        %s226 = ssub.s32 %s20, 1
        %s227 = sand.u32 %s33, 1
        %s228 = scalar_lea.sflag [#allocation3], %s227
        %s229 = sand.u32 %s33, 1
        %s230 = smul.addr %s229, 120
        %s231 = scalar_lea.vmem [#allocation2], %s230
        // Predicated region
        $region33: #{tpu_custom_call.1} parent=31 // pred_check
          %p232 = pneg %p46
        $region34: #{tpu_custom_call.1} parent=31 // pred_check_branch
          %234 = sbr.rel (%p232) target = $region36
        $region35: #{tpu_custom_call.1} parent=31 // pred_region
          %236 = dma.done %s228, 1920
        $region36: #{tpu_custom_call.1} parent=31 // pred_fallthru
          _
        %s237 = sand.u32 %s25, 1
        %s238 = scalar_lea.sflag [#allocation6], %s237
        %s239 = sand.u32 %s59, 1
        %s240 = smul.addr %s239, 120
        %s241 = scalar_lea.vmem [#allocation5], %s240
        // Predicated region
        $region37: #{tpu_custom_call.1} parent=31 // pred_check
          %p242 = pneg %p72
        $region38: #{tpu_custom_call.1} parent=31 // pred_check_branch
          %244 = sbr.rel (%p242) target = $region40
        $region39: #{tpu_custom_call.1} parent=31 // pred_region
          %246 = dma.done %s238, 1920
        $region40: #{tpu_custom_call.1} parent=31 // pred_fallthru
          _
        // Predicated region
        $region41: #{tpu_custom_call.1} parent=31 // pred_check
          %p247 = pneg %p93
        $region42: #{tpu_custom_call.1} parent=31 // pred_check_branch
          %249 = sbr.rel (%p247) target = $region44
        $region43: #{tpu_custom_call.1} parent=31 // pred_region
          %251 = dma.done [#allocation6], 64
        $region44: #{tpu_custom_call.1} parent=31 // pred_fallthru
          _
        %s252 = sand.u32 %s33, 1
        %s253 = scalar_lea.sflag [#allocation3], %s252
        %s254 = sand.u32 %s33, 1
        %s255 = smul.addr %s254, 120
        %s256 = scalar_lea.vmem [#allocation2], %s255
        %p257 = pneg %p46
        %p258 = pneg %p43
        %s259 = sand.u32 %s25, 1
        %s260 = scalar_lea.sflag [#allocation6], %s259
        %s261 = sand.u32 %s59, 1
        %s262 = smul.addr %s261, 120
        %s263 = scalar_lea.vmem [#allocation5], %s262
        %p264 = pneg %p72
        %p265 = pneg %p69
        %p266 = pneg %p93
        %p267 = pneg %p90
        %p268 = pneg %p119
        %p269 = pneg %p116
        %s270 = sand.u32 %s106, 1
        %s271 = scalar_lea.sflag [#allocation4], %s270
        %s272 = sand.u32 %s106, 1
        %s273 = smul.addr %s272, 120
        %s274 = scalar_lea.vmem [#allocation8], %s273
        %p275 = pneg %p145
        %p276 = pneg %p142
        %s277 = smul.u32 15, %s25
        %p278 = scmp.lt.s32.totalorder %s277, 29
        %s279 = scalar_select %p278, %s277, 29
        %s280 = smul.addr %s279, 8
        %s281 = scalar_lea.vmem %s4, %s280
        %s282 = smul.u32 15, %s25
        %s283 = smul.u32 15, %s25
        %s284 = smul.u32 15, %s25
        %s285 = smul.u32 15, %s25
        %p286 = scmp.lt.s32.totalorder %s285, 29
        %s287 = scalar_select %p286, %s285, 29
        %s288 = smul.addr %s287, 8
        %s289 = scalar_lea.vmem %s4, %s288
        %s290 = smul.u32 15, %s25
        %v291 = vld [vmem:[%s231] sm:$0xff]
        %v292 = vld [vmem:[%s231 + $0x8] sm:$0xff]
        %v293 = vld [vmem:[%s231 + $0x10] sm:$0xff]
        %v294 = vld [vmem:[%s231 + $0x18] sm:$0xff]
        %v295 = vld [vmem:[%s231 + $0x20] sm:$0xff]
        %v296 = vld [vmem:[%s231 + $0x28] sm:$0xff]
        %v297 = vld [vmem:[%s231 + $0x30] sm:$0xff]
        %v298 = vld [vmem:[%s231 + $0x38] sm:$0xff]
        %v299 = vld [vmem:[%s231 + $0x40] sm:$0xff]
        %v300 = vld [vmem:[%s231 + $0x48] sm:$0xff]
        %v301 = vld [vmem:[%s231 + $0x50] sm:$0xff]
        %v302 = vld [vmem:[%s231 + $0x58] sm:$0xff]
        %v303 = vld [vmem:[%s231 + $0x60] sm:$0xff]
        %v304 = vld [vmem:[%s231 + $0x68] sm:$0xff]
        %v305 = vld [vmem:[%s231 + $0x70] sm:$0xff]
        %v306 = vld [vmem:[%s241] sm:$0xff]
        %v307 = vld [vmem:[%s241 + $0x8] sm:$0xff]
        %v308 = vld [vmem:[%s241 + $0x10] sm:$0xff]
        %v309 = vld [vmem:[%s241 + $0x18] sm:$0xff]
        %v310 = vld [vmem:[%s241 + $0x20] sm:$0xff]
        %v311 = vld [vmem:[%s241 + $0x28] sm:$0xff]
        %v312 = vld [vmem:[%s241 + $0x30] sm:$0xff]
        %v313 = vld [vmem:[%s241 + $0x38] sm:$0xff]
        %v314 = vld [vmem:[%s241 + $0x40] sm:$0xff]
        %v315 = vld [vmem:[%s241 + $0x48] sm:$0xff]
        %v316 = vld [vmem:[%s241 + $0x50] sm:$0xff]
        %v317 = vld [vmem:[%s241 + $0x58] sm:$0xff]
        %v318 = vld [vmem:[%s241 + $0x60] sm:$0xff]
        %v319 = vld [vmem:[%s241 + $0x68] sm:$0xff]
        %v320 = vld [vmem:[%s241 + $0x70] sm:$0xff]
        %v321 = vld [vmem:[#allocation7] sm:$0xf]
        %v322 = vperm.slane %v321, 0
        %v323 = vmul.f32 %v291, %v322
        %v324 = vmul.f32 %v292, %v322
        %v325 = vmul.f32 %v293, %v322
        %v326 = vmul.f32 %v294, %v322
        %v327 = vmul.f32 %v295, %v322
        %v328 = vmul.f32 %v296, %v322
        %v329 = vmul.f32 %v297, %v322
        %v330 = vmul.f32 %v298, %v322
        %v331 = vmul.f32 %v299, %v322
        %v332 = vmul.f32 %v300, %v322
        %v333 = vmul.f32 %v301, %v322
        %v334 = vmul.f32 %v302, %v322
        %v335 = vmul.f32 %v303, %v322
        %v336 = vmul.f32 %v304, %v322
        %v337 = vmul.f32 %v305, %v322
        %v338 = vperm.slane %v321, 2
        %v339 = vmul.f32 %v306, %v338
        %v340 = vmul.f32 %v307, %v338
        %v341 = vmul.f32 %v308, %v338
        %v342 = vmul.f32 %v309, %v338
        %v343 = vmul.f32 %v310, %v338
        %v344 = vmul.f32 %v311, %v338
        %v345 = vmul.f32 %v312, %v338
        %v346 = vmul.f32 %v313, %v338
        %v347 = vmul.f32 %v314, %v338
        %v348 = vmul.f32 %v315, %v338
        %v349 = vmul.f32 %v316, %v338
        %v350 = vmul.f32 %v317, %v338
        %v351 = vmul.f32 %v318, %v338
        %v352 = vmul.f32 %v319, %v338
        %v353 = vmul.f32 %v320, %v338
        %v354 = vadd.f32 %v323, %v339
        %v355 = vadd.f32 %v324, %v340
        %v356 = vadd.f32 %v325, %v341
        %v357 = vadd.f32 %v326, %v342
        %v358 = vadd.f32 %v327, %v343
        %v359 = vadd.f32 %v328, %v344
        %v360 = vadd.f32 %v329, %v345
        %v361 = vadd.f32 %v330, %v346
        %v362 = vadd.f32 %v331, %v347
        %v363 = vadd.f32 %v332, %v348
        %v364 = vadd.f32 %v333, %v349
        %v365 = vadd.f32 %v334, %v350
        %v366 = vadd.f32 %v335, %v351
        %v367 = vadd.f32 %v336, %v352
        %v368 = vadd.f32 %v337, %v353
        %369 = vadd.xlane.f32.xlu0 %v354
        %v370 = vpop.xlane.xlu0 %369
        %371 = vadd.xlane.f32.xlu0 %v355
        %v372 = vpop.xlane.xlu0 %371
        %373 = vadd.xlane.f32.xlu0 %v356
        %v374 = vpop.xlane.xlu0 %373
        %375 = vadd.xlane.f32.xlu0 %v357
        %v376 = vpop.xlane.xlu0 %375
        %377 = vadd.xlane.f32.xlu0 %v358
        %v378 = vpop.xlane.xlu0 %377
        %379 = vadd.xlane.f32.xlu0 %v359
        %v380 = vpop.xlane.xlu0 %379
        %381 = vadd.xlane.f32.xlu0 %v360
        %v382 = vpop.xlane.xlu0 %381
        %383 = vadd.xlane.f32.xlu0 %v361
        %v384 = vpop.xlane.xlu0 %383
        %385 = vadd.xlane.f32.xlu0 %v362
        %v386 = vpop.xlane.xlu0 %385
        %387 = vadd.xlane.f32.xlu0 %v363
        %v388 = vpop.xlane.xlu0 %387
        %389 = vadd.xlane.f32.xlu0 %v364
        %v390 = vpop.xlane.xlu0 %389
        %391 = vadd.xlane.f32.xlu0 %v365
        %v392 = vpop.xlane.xlu0 %391
        %393 = vadd.xlane.f32.xlu0 %v366
        %v394 = vpop.xlane.xlu0 %393
        %395 = vadd.xlane.f32.xlu0 %v367
        %v396 = vpop.xlane.xlu0 %395
        %397 = vadd.xlane.f32.xlu0 %v368
        %v398 = vpop.xlane.xlu0 %397
        %v399 = vperm.slane %v321, 1
        %v400 = vmul.f32 %v291, %v399
        %v401 = vmul.f32 %v292, %v399
        %v402 = vmul.f32 %v293, %v399
        %v403 = vmul.f32 %v294, %v399
        %v404 = vmul.f32 %v295, %v399
        %v405 = vmul.f32 %v296, %v399
        %v406 = vmul.f32 %v297, %v399
        %v407 = vmul.f32 %v298, %v399
        %v408 = vmul.f32 %v299, %v399
        %v409 = vmul.f32 %v300, %v399
        %v410 = vmul.f32 %v301, %v399
        %v411 = vmul.f32 %v302, %v399
        %v412 = vmul.f32 %v303, %v399
        %v413 = vmul.f32 %v304, %v399
        %v414 = vmul.f32 %v305, %v399
        %v415 = vperm.slane %v321, 3
        %v416 = vmul.f32 %v306, %v415
        %v417 = vmul.f32 %v307, %v415
        %v418 = vmul.f32 %v308, %v415
        %v419 = vmul.f32 %v309, %v415
        %v420 = vmul.f32 %v310, %v415
        %v421 = vmul.f32 %v311, %v415
        %v422 = vmul.f32 %v312, %v415
        %v423 = vmul.f32 %v313, %v415
        %v424 = vmul.f32 %v314, %v415
        %v425 = vmul.f32 %v315, %v415
        %v426 = vmul.f32 %v316, %v415
        %v427 = vmul.f32 %v317, %v415
        %v428 = vmul.f32 %v318, %v415
        %v429 = vmul.f32 %v319, %v415
        %v430 = vmul.f32 %v320, %v415
        %v431 = vadd.f32 %v400, %v416
        %v432 = vadd.f32 %v401, %v417
        %v433 = vadd.f32 %v402, %v418
        %v434 = vadd.f32 %v403, %v419
        %v435 = vadd.f32 %v404, %v420
        %v436 = vadd.f32 %v405, %v421
        %v437 = vadd.f32 %v406, %v422
        %v438 = vadd.f32 %v407, %v423
        %v439 = vadd.f32 %v408, %v424
        %v440 = vadd.f32 %v409, %v425
        %v441 = vadd.f32 %v410, %v426
        %v442 = vadd.f32 %v411, %v427
        %v443 = vadd.f32 %v412, %v428
        %v444 = vadd.f32 %v413, %v429
        %v445 = vadd.f32 %v414, %v430
        %446 = vadd.xlane.f32.xlu0 %v431
        %v447 = vpop.xlane.xlu0 %446
        %448 = vadd.xlane.f32.xlu0 %v432
        %v449 = vpop.xlane.xlu0 %448
        %450 = vadd.xlane.f32.xlu0 %v433
        %v451 = vpop.xlane.xlu0 %450
        %452 = vadd.xlane.f32.xlu0 %v434
        %v453 = vpop.xlane.xlu0 %452
        %454 = vadd.xlane.f32.xlu0 %v435
        %v455 = vpop.xlane.xlu0 %454
        %456 = vadd.xlane.f32.xlu0 %v436
        %v457 = vpop.xlane.xlu0 %456
        %458 = vadd.xlane.f32.xlu0 %v437
        %v459 = vpop.xlane.xlu0 %458
        %460 = vadd.xlane.f32.xlu0 %v438
        %v461 = vpop.xlane.xlu0 %460
        %462 = vadd.xlane.f32.xlu0 %v439
        %v463 = vpop.xlane.xlu0 %462
        %464 = vadd.xlane.f32.xlu0 %v440
        %v465 = vpop.xlane.xlu0 %464
        %466 = vadd.xlane.f32.xlu0 %v441
        %v467 = vpop.xlane.xlu0 %466
        %468 = vadd.xlane.f32.xlu0 %v442
        %v469 = vpop.xlane.xlu0 %468
        %470 = vadd.xlane.f32.xlu0 %v443
        %v471 = vpop.xlane.xlu0 %470
        %472 = vadd.xlane.f32.xlu0 %v444
        %v473 = vpop.xlane.xlu0 %472
        %474 = vadd.xlane.f32.xlu0 %v445
        %v475 = vpop.xlane.xlu0 %474
        %v476 = vxor.u32 %v370, 2147483648
        %v477 = vxor.u32 %v372, 2147483648
        %v478 = vxor.u32 %v374, 2147483648
        %v479 = vxor.u32 %v376, 2147483648
        %v480 = vxor.u32 %v378, 2147483648
        %v481 = vxor.u32 %v380, 2147483648
        %v482 = vxor.u32 %v382, 2147483648
        %v483 = vxor.u32 %v384, 2147483648
        %v484 = vxor.u32 %v386, 2147483648
        %v485 = vxor.u32 %v388, 2147483648
        %v486 = vxor.u32 %v390, 2147483648
        %v487 = vxor.u32 %v392, 2147483648
        %v488 = vxor.u32 %v394, 2147483648
        %v489 = vxor.u32 %v396, 2147483648
        %v490 = vxor.u32 %v398, 2147483648
        %v491 = vmul.f32 %v476, 1.442695
        %v492 = vpow.pop %v491
        %v493 = vmul.f32 %v477, 1.442695
        %v494 = vpow.pop %v493
        %v495 = vmul.f32 %v478, 1.442695
        %v496 = vpow.pop %v495
        %v497 = vmul.f32 %v479, 1.442695
        %v498 = vpow.pop %v497
        %v499 = vmul.f32 %v480, 1.442695
        %v500 = vpow.pop %v499
        %v501 = vmul.f32 %v481, 1.442695
        %v502 = vpow.pop %v501
        %v503 = vmul.f32 %v482, 1.442695
        %v504 = vpow.pop %v503
        %v505 = vmul.f32 %v483, 1.442695
        %v506 = vpow.pop %v505
        %v507 = vmul.f32 %v484, 1.442695
        %v508 = vpow.pop %v507
        %v509 = vmul.f32 %v485, 1.442695
        %v510 = vpow.pop %v509
        %v511 = vmul.f32 %v486, 1.442695
        %v512 = vpow.pop %v511
        %v513 = vmul.f32 %v487, 1.442695
        %v514 = vpow.pop %v513
        %v515 = vmul.f32 %v488, 1.442695
        %v516 = vpow.pop %v515
        %v517 = vmul.f32 %v489, 1.442695
        %v518 = vpow.pop %v517
        %v519 = vmul.f32 %v490, 1.442695
        %v520 = vpow.pop %v519
        %v521 = vadd.f32 %v492, 1.0
        %v522 = vadd.f32 %v494, 1.0
        %v523 = vadd.f32 %v496, 1.0
        %v524 = vadd.f32 %v498, 1.0
        %v525 = vadd.f32 %v500, 1.0
        %v526 = vadd.f32 %v502, 1.0
        %v527 = vadd.f32 %v504, 1.0
        %v528 = vadd.f32 %v506, 1.0
        %v529 = vadd.f32 %v508, 1.0
        %v530 = vadd.f32 %v510, 1.0
        %v531 = vadd.f32 %v512, 1.0
        %v532 = vadd.f32 %v514, 1.0
        %v533 = vadd.f32 %v516, 1.0
        %v534 = vadd.f32 %v518, 1.0
        %v535 = vadd.f32 %v520, 1.0
        %v536 = vrcp.pop %v521
        %v537 = vmul.f32 %v521, %v536
        %v538 = vsub.f32 1.0, %v537
        %v539 = vmul.f32 %v536, %v538
        %v540 = vadd.f32 %v536, %v539
        %vm541 = vweird.f32 %v521
        %vm542 = vweird.f32 %v536
        %vm543 = vmor %vm541, %vm542
        %v544 = vsel %vm543, %v536, %v540
        %v545 = vand.u32 2147483647, %v521
        %vm546 = vcmp.eq.f32.partialorder %v545, 8.507059e+37
        %v547 = vand.u32 %v521, 2147483648
        %v548 = vor.u32 1.1754944e-38, %v547
        %v549 = vsel %vm546, %v548, %v544
        %v550 = vmul.f32 1.0, %v549
        %v551 = vrcp.pop %v522
        %v552 = vmul.f32 %v522, %v551
        %v553 = vsub.f32 1.0, %v552
        %v554 = vmul.f32 %v551, %v553
        %v555 = vadd.f32 %v551, %v554
        %vm556 = vweird.f32 %v522
        %vm557 = vweird.f32 %v551
        %vm558 = vmor %vm556, %vm557
        %v559 = vsel %vm558, %v551, %v555
        %v560 = vand.u32 2147483647, %v522
        %vm561 = vcmp.eq.f32.partialorder %v560, 8.507059e+37
        %v562 = vand.u32 %v522, 2147483648
        %v563 = vor.u32 1.1754944e-38, %v562
        %v564 = vsel %vm561, %v563, %v559
        %v565 = vmul.f32 1.0, %v564
        %v566 = vrcp.pop %v523
        %v567 = vmul.f32 %v523, %v566
        %v568 = vsub.f32 1.0, %v567
        %v569 = vmul.f32 %v566, %v568
        %v570 = vadd.f32 %v566, %v569
        %vm571 = vweird.f32 %v523
        %vm572 = vweird.f32 %v566
        %vm573 = vmor %vm571, %vm572
        %v574 = vsel %vm573, %v566, %v570
        %v575 = vand.u32 2147483647, %v523
        %vm576 = vcmp.eq.f32.partialorder %v575, 8.507059e+37
        %v577 = vand.u32 %v523, 2147483648
        %v578 = vor.u32 1.1754944e-38, %v577
        %v579 = vsel %vm576, %v578, %v574
        %v580 = vmul.f32 1.0, %v579
        %v581 = vrcp.pop %v524
        %v582 = vmul.f32 %v524, %v581
        %v583 = vsub.f32 1.0, %v582
        %v584 = vmul.f32 %v581, %v583
        %v585 = vadd.f32 %v581, %v584
        %vm586 = vweird.f32 %v524
        %vm587 = vweird.f32 %v581
        %vm588 = vmor %vm586, %vm587
        %v589 = vsel %vm588, %v581, %v585
        %v590 = vand.u32 2147483647, %v524
        %vm591 = vcmp.eq.f32.partialorder %v590, 8.507059e+37
        %v592 = vand.u32 %v524, 2147483648
        %v593 = vor.u32 1.1754944e-38, %v592
        %v594 = vsel %vm591, %v593, %v589
        %v595 = vmul.f32 1.0, %v594
        %v596 = vrcp.pop %v525
        %v597 = vmul.f32 %v525, %v596
        %v598 = vsub.f32 1.0, %v597
        %v599 = vmul.f32 %v596, %v598
        %v600 = vadd.f32 %v596, %v599
        %vm601 = vweird.f32 %v525
        %vm602 = vweird.f32 %v596
        %vm603 = vmor %vm601, %vm602
        %v604 = vsel %vm603, %v596, %v600
        %v605 = vand.u32 2147483647, %v525
        %vm606 = vcmp.eq.f32.partialorder %v605, 8.507059e+37
        %v607 = vand.u32 %v525, 2147483648
        %v608 = vor.u32 1.1754944e-38, %v607
        %v609 = vsel %vm606, %v608, %v604
        %v610 = vmul.f32 1.0, %v609
        %v611 = vrcp.pop %v526
        %v612 = vmul.f32 %v526, %v611
        %v613 = vsub.f32 1.0, %v612
        %v614 = vmul.f32 %v611, %v613
        %v615 = vadd.f32 %v611, %v614
        %vm616 = vweird.f32 %v526
        %vm617 = vweird.f32 %v611
        %vm618 = vmor %vm616, %vm617
        %v619 = vsel %vm618, %v611, %v615
        %v620 = vand.u32 2147483647, %v526
        %vm621 = vcmp.eq.f32.partialorder %v620, 8.507059e+37
        %v622 = vand.u32 %v526, 2147483648
        %v623 = vor.u32 1.1754944e-38, %v622
        %v624 = vsel %vm621, %v623, %v619
        %v625 = vmul.f32 1.0, %v624
        %v626 = vrcp.pop %v527
        %v627 = vmul.f32 %v527, %v626
        %v628 = vsub.f32 1.0, %v627
        %v629 = vmul.f32 %v626, %v628
        %v630 = vadd.f32 %v626, %v629
        %vm631 = vweird.f32 %v527
        %vm632 = vweird.f32 %v626
        %vm633 = vmor %vm631, %vm632
        %v634 = vsel %vm633, %v626, %v630
        %v635 = vand.u32 2147483647, %v527
        %vm636 = vcmp.eq.f32.partialorder %v635, 8.507059e+37
        %v637 = vand.u32 %v527, 2147483648
        %v638 = vor.u32 1.1754944e-38, %v637
        %v639 = vsel %vm636, %v638, %v634
        %v640 = vmul.f32 1.0, %v639
        %v641 = vrcp.pop %v528
        %v642 = vmul.f32 %v528, %v641
        %v643 = vsub.f32 1.0, %v642
        %v644 = vmul.f32 %v641, %v643
        %v645 = vadd.f32 %v641, %v644
        %vm646 = vweird.f32 %v528
        %vm647 = vweird.f32 %v641
        %vm648 = vmor %vm646, %vm647
        %v649 = vsel %vm648, %v641, %v645
        %v650 = vand.u32 2147483647, %v528
        %vm651 = vcmp.eq.f32.partialorder %v650, 8.507059e+37
        %v652 = vand.u32 %v528, 2147483648
        %v653 = vor.u32 1.1754944e-38, %v652
        %v654 = vsel %vm651, %v653, %v649
        %v655 = vmul.f32 1.0, %v654
        %v656 = vrcp.pop %v529
        %v657 = vmul.f32 %v529, %v656
        %v658 = vsub.f32 1.0, %v657
        %v659 = vmul.f32 %v656, %v658
        %v660 = vadd.f32 %v656, %v659
        %vm661 = vweird.f32 %v529
        %vm662 = vweird.f32 %v656
        %vm663 = vmor %vm661, %vm662
        %v664 = vsel %vm663, %v656, %v660
        %v665 = vand.u32 2147483647, %v529
        %vm666 = vcmp.eq.f32.partialorder %v665, 8.507059e+37
        %v667 = vand.u32 %v529, 2147483648
        %v668 = vor.u32 1.1754944e-38, %v667
        %v669 = vsel %vm666, %v668, %v664
        %v670 = vmul.f32 1.0, %v669
        %v671 = vrcp.pop %v530
        %v672 = vmul.f32 %v530, %v671
        %v673 = vsub.f32 1.0, %v672
        %v674 = vmul.f32 %v671, %v673
        %v675 = vadd.f32 %v671, %v674
        %vm676 = vweird.f32 %v530
        %vm677 = vweird.f32 %v671
        %vm678 = vmor %vm676, %vm677
        %v679 = vsel %vm678, %v671, %v675
        %v680 = vand.u32 2147483647, %v530
        %vm681 = vcmp.eq.f32.partialorder %v680, 8.507059e+37
        %v682 = vand.u32 %v530, 2147483648
        %v683 = vor.u32 1.1754944e-38, %v682
        %v684 = vsel %vm681, %v683, %v679
        %v685 = vmul.f32 1.0, %v684
        %v686 = vrcp.pop %v531
        %v687 = vmul.f32 %v531, %v686
        %v688 = vsub.f32 1.0, %v687
        %v689 = vmul.f32 %v686, %v688
        %v690 = vadd.f32 %v686, %v689
        %vm691 = vweird.f32 %v531
        %vm692 = vweird.f32 %v686
        %vm693 = vmor %vm691, %vm692
        %v694 = vsel %vm693, %v686, %v690
        %v695 = vand.u32 2147483647, %v531
        %vm696 = vcmp.eq.f32.partialorder %v695, 8.507059e+37
        %v697 = vand.u32 %v531, 2147483648
        %v698 = vor.u32 1.1754944e-38, %v697
        %v699 = vsel %vm696, %v698, %v694
        %v700 = vmul.f32 1.0, %v699
        %v701 = vrcp.pop %v532
        %v702 = vmul.f32 %v532, %v701
        %v703 = vsub.f32 1.0, %v702
        %v704 = vmul.f32 %v701, %v703
        %v705 = vadd.f32 %v701, %v704
        %vm706 = vweird.f32 %v532
        %vm707 = vweird.f32 %v701
        %vm708 = vmor %vm706, %vm707
        %v709 = vsel %vm708, %v701, %v705
        %v710 = vand.u32 2147483647, %v532
        %vm711 = vcmp.eq.f32.partialorder %v710, 8.507059e+37
        %v712 = vand.u32 %v532, 2147483648
        %v713 = vor.u32 1.1754944e-38, %v712
        %v714 = vsel %vm711, %v713, %v709
        %v715 = vmul.f32 1.0, %v714
        %v716 = vrcp.pop %v533
        %v717 = vmul.f32 %v533, %v716
        %v718 = vsub.f32 1.0, %v717
        %v719 = vmul.f32 %v716, %v718
        %v720 = vadd.f32 %v716, %v719
        %vm721 = vweird.f32 %v533
        %vm722 = vweird.f32 %v716
        %vm723 = vmor %vm721, %vm722
        %v724 = vsel %vm723, %v716, %v720
        %v725 = vand.u32 2147483647, %v533
        %vm726 = vcmp.eq.f32.partialorder %v725, 8.507059e+37
        %v727 = vand.u32 %v533, 2147483648
        %v728 = vor.u32 1.1754944e-38, %v727
        %v729 = vsel %vm726, %v728, %v724
        %v730 = vmul.f32 1.0, %v729
        %v731 = vrcp.pop %v534
        %v732 = vmul.f32 %v534, %v731
        %v733 = vsub.f32 1.0, %v732
        %v734 = vmul.f32 %v731, %v733
        %v735 = vadd.f32 %v731, %v734
        %vm736 = vweird.f32 %v534
        %vm737 = vweird.f32 %v731
        %vm738 = vmor %vm736, %vm737
        %v739 = vsel %vm738, %v731, %v735
        %v740 = vand.u32 2147483647, %v534
        %vm741 = vcmp.eq.f32.partialorder %v740, 8.507059e+37
        %v742 = vand.u32 %v534, 2147483648
        %v743 = vor.u32 1.1754944e-38, %v742
        %v744 = vsel %vm741, %v743, %v739
        %v745 = vmul.f32 1.0, %v744
        %v746 = vrcp.pop %v535
        %v747 = vmul.f32 %v535, %v746
        %v748 = vsub.f32 1.0, %v747
        %v749 = vmul.f32 %v746, %v748
        %v750 = vadd.f32 %v746, %v749
        %vm751 = vweird.f32 %v535
        %vm752 = vweird.f32 %v746
        %vm753 = vmor %vm751, %vm752
        %v754 = vsel %vm753, %v746, %v750
        %v755 = vand.u32 2147483647, %v535
        %vm756 = vcmp.eq.f32.partialorder %v755, 8.507059e+37
        %v757 = vand.u32 %v535, 2147483648
        %v758 = vor.u32 1.1754944e-38, %v757
        %v759 = vsel %vm756, %v758, %v754
        %v760 = vmul.f32 1.0, %v759
        %v761 = vxor.u32 %v447, 2147483648
        %v762 = vxor.u32 %v449, 2147483648
        %v763 = vxor.u32 %v451, 2147483648
        %v764 = vxor.u32 %v453, 2147483648
        %v765 = vxor.u32 %v455, 2147483648
        %v766 = vxor.u32 %v457, 2147483648
        %v767 = vxor.u32 %v459, 2147483648
        %v768 = vxor.u32 %v461, 2147483648
        %v769 = vxor.u32 %v463, 2147483648
        %v770 = vxor.u32 %v465, 2147483648
        %v771 = vxor.u32 %v467, 2147483648
        %v772 = vxor.u32 %v469, 2147483648
        %v773 = vxor.u32 %v471, 2147483648
        %v774 = vxor.u32 %v473, 2147483648
        %v775 = vxor.u32 %v475, 2147483648
        %v776 = vmul.f32 %v761, 1.442695
        %v777 = vpow.pop %v776
        %v778 = vmul.f32 %v762, 1.442695
        %v779 = vpow.pop %v778
        %v780 = vmul.f32 %v763, 1.442695
        %v781 = vpow.pop %v780
        %v782 = vmul.f32 %v764, 1.442695
        %v783 = vpow.pop %v782
        %v784 = vmul.f32 %v765, 1.442695
        %v785 = vpow.pop %v784
        %v786 = vmul.f32 %v766, 1.442695
        %v787 = vpow.pop %v786
        %v788 = vmul.f32 %v767, 1.442695
        %v789 = vpow.pop %v788
        %v790 = vmul.f32 %v768, 1.442695
        %v791 = vpow.pop %v790
        %v792 = vmul.f32 %v769, 1.442695
        %v793 = vpow.pop %v792
        %v794 = vmul.f32 %v770, 1.442695
        %v795 = vpow.pop %v794
        %v796 = vmul.f32 %v771, 1.442695
        %v797 = vpow.pop %v796
        %v798 = vmul.f32 %v772, 1.442695
        %v799 = vpow.pop %v798
        %v800 = vmul.f32 %v773, 1.442695
        %v801 = vpow.pop %v800
        %v802 = vmul.f32 %v774, 1.442695
        %v803 = vpow.pop %v802
        %v804 = vmul.f32 %v775, 1.442695
        %v805 = vpow.pop %v804
        %v806 = vadd.f32 %v777, 1.0
        %v807 = vadd.f32 %v779, 1.0
        %v808 = vadd.f32 %v781, 1.0
        %v809 = vadd.f32 %v783, 1.0
        %v810 = vadd.f32 %v785, 1.0
        %v811 = vadd.f32 %v787, 1.0
        %v812 = vadd.f32 %v789, 1.0
        %v813 = vadd.f32 %v791, 1.0
        %v814 = vadd.f32 %v793, 1.0
        %v815 = vadd.f32 %v795, 1.0
        %v816 = vadd.f32 %v797, 1.0
        %v817 = vadd.f32 %v799, 1.0
        %v818 = vadd.f32 %v801, 1.0
        %v819 = vadd.f32 %v803, 1.0
        %v820 = vadd.f32 %v805, 1.0
        %v821 = vrcp.pop %v806
        %v822 = vmul.f32 %v806, %v821
        %v823 = vsub.f32 1.0, %v822
        %v824 = vmul.f32 %v821, %v823
        %v825 = vadd.f32 %v821, %v824
        %vm826 = vweird.f32 %v806
        %vm827 = vweird.f32 %v821
        %vm828 = vmor %vm826, %vm827
        %v829 = vsel %vm828, %v821, %v825
        %v830 = vand.u32 2147483647, %v806
        %vm831 = vcmp.eq.f32.partialorder %v830, 8.507059e+37
        %v832 = vand.u32 %v806, 2147483648
        %v833 = vor.u32 1.1754944e-38, %v832
        %v834 = vsel %vm831, %v833, %v829
        %v835 = vmul.f32 1.0, %v834
        %v836 = vrcp.pop %v807
        %v837 = vmul.f32 %v807, %v836
        %v838 = vsub.f32 1.0, %v837
        %v839 = vmul.f32 %v836, %v838
        %v840 = vadd.f32 %v836, %v839
        %vm841 = vweird.f32 %v807
        %vm842 = vweird.f32 %v836
        %vm843 = vmor %vm841, %vm842
        %v844 = vsel %vm843, %v836, %v840
        %v845 = vand.u32 2147483647, %v807
        %vm846 = vcmp.eq.f32.partialorder %v845, 8.507059e+37
        %v847 = vand.u32 %v807, 2147483648
        %v848 = vor.u32 1.1754944e-38, %v847
        %v849 = vsel %vm846, %v848, %v844
        %v850 = vmul.f32 1.0, %v849
        %v851 = vrcp.pop %v808
        %v852 = vmul.f32 %v808, %v851
        %v853 = vsub.f32 1.0, %v852
        %v854 = vmul.f32 %v851, %v853
        %v855 = vadd.f32 %v851, %v854
        %vm856 = vweird.f32 %v808
        %vm857 = vweird.f32 %v851
        %vm858 = vmor %vm856, %vm857
        %v859 = vsel %vm858, %v851, %v855
        %v860 = vand.u32 2147483647, %v808
        %vm861 = vcmp.eq.f32.partialorder %v860, 8.507059e+37
        %v862 = vand.u32 %v808, 2147483648
        %v863 = vor.u32 1.1754944e-38, %v862
        %v864 = vsel %vm861, %v863, %v859
        %v865 = vmul.f32 1.0, %v864
        %v866 = vrcp.pop %v809
        %v867 = vmul.f32 %v809, %v866
        %v868 = vsub.f32 1.0, %v867
        %v869 = vmul.f32 %v866, %v868
        %v870 = vadd.f32 %v866, %v869
        %vm871 = vweird.f32 %v809
        %vm872 = vweird.f32 %v866
        %vm873 = vmor %vm871, %vm872
        %v874 = vsel %vm873, %v866, %v870
        %v875 = vand.u32 2147483647, %v809
        %vm876 = vcmp.eq.f32.partialorder %v875, 8.507059e+37
        %v877 = vand.u32 %v809, 2147483648
        %v878 = vor.u32 1.1754944e-38, %v877
        %v879 = vsel %vm876, %v878, %v874
        %v880 = vmul.f32 1.0, %v879
        %v881 = vrcp.pop %v810
        %v882 = vmul.f32 %v810, %v881
        %v883 = vsub.f32 1.0, %v882
        %v884 = vmul.f32 %v881, %v883
        %v885 = vadd.f32 %v881, %v884
        %vm886 = vweird.f32 %v810
        %vm887 = vweird.f32 %v881
        %vm888 = vmor %vm886, %vm887
        %v889 = vsel %vm888, %v881, %v885
        %v890 = vand.u32 2147483647, %v810
        %vm891 = vcmp.eq.f32.partialorder %v890, 8.507059e+37
        %v892 = vand.u32 %v810, 2147483648
        %v893 = vor.u32 1.1754944e-38, %v892
        %v894 = vsel %vm891, %v893, %v889
        %v895 = vmul.f32 1.0, %v894
        %v896 = vrcp.pop %v811
        %v897 = vmul.f32 %v811, %v896
        %v898 = vsub.f32 1.0, %v897
        %v899 = vmul.f32 %v896, %v898
        %v900 = vadd.f32 %v896, %v899
        %vm901 = vweird.f32 %v811
        %vm902 = vweird.f32 %v896
        %vm903 = vmor %vm901, %vm902
        %v904 = vsel %vm903, %v896, %v900
        %v905 = vand.u32 2147483647, %v811
        %vm906 = vcmp.eq.f32.partialorder %v905, 8.507059e+37
        %v907 = vand.u32 %v811, 2147483648
        %v908 = vor.u32 1.1754944e-38, %v907
        %v909 = vsel %vm906, %v908, %v904
        %v910 = vmul.f32 1.0, %v909
        %v911 = vrcp.pop %v812
        %v912 = vmul.f32 %v812, %v911
        %v913 = vsub.f32 1.0, %v912
        %v914 = vmul.f32 %v911, %v913
        %v915 = vadd.f32 %v911, %v914
        %vm916 = vweird.f32 %v812
        %vm917 = vweird.f32 %v911
        %vm918 = vmor %vm916, %vm917
        %v919 = vsel %vm918, %v911, %v915
        %v920 = vand.u32 2147483647, %v812
        %vm921 = vcmp.eq.f32.partialorder %v920, 8.507059e+37
        %v922 = vand.u32 %v812, 2147483648
        %v923 = vor.u32 1.1754944e-38, %v922
        %v924 = vsel %vm921, %v923, %v919
        %v925 = vmul.f32 1.0, %v924
        %v926 = vrcp.pop %v813
        %v927 = vmul.f32 %v813, %v926
        %v928 = vsub.f32 1.0, %v927
        %v929 = vmul.f32 %v926, %v928
        %v930 = vadd.f32 %v926, %v929
        %vm931 = vweird.f32 %v813
        %vm932 = vweird.f32 %v926
        %vm933 = vmor %vm931, %vm932
        %v934 = vsel %vm933, %v926, %v930
        %v935 = vand.u32 2147483647, %v813
        %vm936 = vcmp.eq.f32.partialorder %v935, 8.507059e+37
        %v937 = vand.u32 %v813, 2147483648
        %v938 = vor.u32 1.1754944e-38, %v937
        %v939 = vsel %vm936, %v938, %v934
        %v940 = vmul.f32 1.0, %v939
        %v941 = vrcp.pop %v814
        %v942 = vmul.f32 %v814, %v941
        %v943 = vsub.f32 1.0, %v942
        %v944 = vmul.f32 %v941, %v943
        %v945 = vadd.f32 %v941, %v944
        %vm946 = vweird.f32 %v814
        %vm947 = vweird.f32 %v941
        %vm948 = vmor %vm946, %vm947
        %v949 = vsel %vm948, %v941, %v945
        %v950 = vand.u32 2147483647, %v814
        %vm951 = vcmp.eq.f32.partialorder %v950, 8.507059e+37
        %v952 = vand.u32 %v814, 2147483648
        %v953 = vor.u32 1.1754944e-38, %v952
        %v954 = vsel %vm951, %v953, %v949
        %v955 = vmul.f32 1.0, %v954
        %v956 = vrcp.pop %v815
        %v957 = vmul.f32 %v815, %v956
        %v958 = vsub.f32 1.0, %v957
        %v959 = vmul.f32 %v956, %v958
        %v960 = vadd.f32 %v956, %v959
        %vm961 = vweird.f32 %v815
        %vm962 = vweird.f32 %v956
        %vm963 = vmor %vm961, %vm962
        %v964 = vsel %vm963, %v956, %v960
        %v965 = vand.u32 2147483647, %v815
        %vm966 = vcmp.eq.f32.partialorder %v965, 8.507059e+37
        %v967 = vand.u32 %v815, 2147483648
        %v968 = vor.u32 1.1754944e-38, %v967
        %v969 = vsel %vm966, %v968, %v964
        %v970 = vmul.f32 1.0, %v969
        %v971 = vrcp.pop %v816
        %v972 = vmul.f32 %v816, %v971
        %v973 = vsub.f32 1.0, %v972
        %v974 = vmul.f32 %v971, %v973
        %v975 = vadd.f32 %v971, %v974
        %vm976 = vweird.f32 %v816
        %vm977 = vweird.f32 %v971
        %vm978 = vmor %vm976, %vm977
        %v979 = vsel %vm978, %v971, %v975
        %v980 = vand.u32 2147483647, %v816
        %vm981 = vcmp.eq.f32.partialorder %v980, 8.507059e+37
        %v982 = vand.u32 %v816, 2147483648
        %v983 = vor.u32 1.1754944e-38, %v982
        %v984 = vsel %vm981, %v983, %v979
        %v985 = vmul.f32 1.0, %v984
        %v986 = vrcp.pop %v817
        %v987 = vmul.f32 %v817, %v986
        %v988 = vsub.f32 1.0, %v987
        %v989 = vmul.f32 %v986, %v988
        %v990 = vadd.f32 %v986, %v989
        %vm991 = vweird.f32 %v817
        %vm992 = vweird.f32 %v986
        %vm993 = vmor %vm991, %vm992
        %v994 = vsel %vm993, %v986, %v990
        %v995 = vand.u32 2147483647, %v817
        %vm996 = vcmp.eq.f32.partialorder %v995, 8.507059e+37
        %v997 = vand.u32 %v817, 2147483648
        %v998 = vor.u32 1.1754944e-38, %v997
        %v999 = vsel %vm996, %v998, %v994
        %v1000 = vmul.f32 1.0, %v999
        %v1001 = vrcp.pop %v818
        %v1002 = vmul.f32 %v818, %v1001
        %v1003 = vsub.f32 1.0, %v1002
        %v1004 = vmul.f32 %v1001, %v1003
        %v1005 = vadd.f32 %v1001, %v1004
        %vm1006 = vweird.f32 %v818
        %vm1007 = vweird.f32 %v1001
        %vm1008 = vmor %vm1006, %vm1007
        %v1009 = vsel %vm1008, %v1001, %v1005
        %v1010 = vand.u32 2147483647, %v818
        %vm1011 = vcmp.eq.f32.partialorder %v1010, 8.507059e+37
        %v1012 = vand.u32 %v818, 2147483648
        %v1013 = vor.u32 1.1754944e-38, %v1012
        %v1014 = vsel %vm1011, %v1013, %v1009
        %v1015 = vmul.f32 1.0, %v1014
        %v1016 = vrcp.pop %v819
        %v1017 = vmul.f32 %v819, %v1016
        %v1018 = vsub.f32 1.0, %v1017
        %v1019 = vmul.f32 %v1016, %v1018
        %v1020 = vadd.f32 %v1016, %v1019
        %vm1021 = vweird.f32 %v819
        %vm1022 = vweird.f32 %v1016
        %vm1023 = vmor %vm1021, %vm1022
        %v1024 = vsel %vm1023, %v1016, %v1020
        %v1025 = vand.u32 2147483647, %v819
        %vm1026 = vcmp.eq.f32.partialorder %v1025, 8.507059e+37
        %v1027 = vand.u32 %v819, 2147483648
        %v1028 = vor.u32 1.1754944e-38, %v1027
        %v1029 = vsel %vm1026, %v1028, %v1024
        %v1030 = vmul.f32 1.0, %v1029
        %v1031 = vrcp.pop %v820
        %v1032 = vmul.f32 %v820, %v1031
        %v1033 = vsub.f32 1.0, %v1032
        %v1034 = vmul.f32 %v1031, %v1033
        %v1035 = vadd.f32 %v1031, %v1034
        %vm1036 = vweird.f32 %v820
        %vm1037 = vweird.f32 %v1031
        %vm1038 = vmor %vm1036, %vm1037
        %v1039 = vsel %vm1038, %v1031, %v1035
        %v1040 = vand.u32 2147483647, %v820
        %vm1041 = vcmp.eq.f32.partialorder %v1040, 8.507059e+37
        %v1042 = vand.u32 %v820, 2147483648
        %v1043 = vor.u32 1.1754944e-38, %v1042
        %v1044 = vsel %vm1041, %v1043, %v1039
        %v1045 = vmul.f32 1.0, %v1044
        %v1046 = vmul.f32 %v291, %v550
        %v1047 = vmul.f32 %v292, %v565
        %v1048 = vmul.f32 %v293, %v580
        %v1049 = vmul.f32 %v294, %v595
        %v1050 = vmul.f32 %v295, %v610
        %v1051 = vmul.f32 %v296, %v625
        %v1052 = vmul.f32 %v297, %v640
        %v1053 = vmul.f32 %v298, %v655
        %v1054 = vmul.f32 %v299, %v670
        %v1055 = vmul.f32 %v300, %v685
        %v1056 = vmul.f32 %v301, %v700
        %v1057 = vmul.f32 %v302, %v715
        %v1058 = vmul.f32 %v303, %v730
        %v1059 = vmul.f32 %v304, %v745
        %v1060 = vmul.f32 %v305, %v760
        %v1061 = vmul.f32 %v306, %v835
        %v1062 = vmul.f32 %v307, %v850
        %v1063 = vmul.f32 %v308, %v865
        %v1064 = vmul.f32 %v309, %v880
        %v1065 = vmul.f32 %v310, %v895
        %v1066 = vmul.f32 %v311, %v910
        %v1067 = vmul.f32 %v312, %v925
        %v1068 = vmul.f32 %v313, %v940
        %v1069 = vmul.f32 %v314, %v955
        %v1070 = vmul.f32 %v315, %v970
        %v1071 = vmul.f32 %v316, %v985
        %v1072 = vmul.f32 %v317, %v1000
        %v1073 = vmul.f32 %v318, %v1015
        %v1074 = vmul.f32 %v319, %v1030
        %v1075 = vmul.f32 %v320, %v1045
        %v1076 = vadd.f32 %v1046, %v1061
        %v1077 = vadd.f32 %v1047, %v1062
        %v1078 = vadd.f32 %v1048, %v1063
        %v1079 = vadd.f32 %v1049, %v1064
        %v1080 = vadd.f32 %v1050, %v1065
        %v1081 = vadd.f32 %v1051, %v1066
        %v1082 = vadd.f32 %v1052, %v1067
        %v1083 = vadd.f32 %v1053, %v1068
        %v1084 = vadd.f32 %v1054, %v1069
        %v1085 = vadd.f32 %v1055, %v1070
        %v1086 = vadd.f32 %v1056, %v1071
        %v1087 = vadd.f32 %v1057, %v1072
        %v1088 = vadd.f32 %v1058, %v1073
        %v1089 = vadd.f32 %v1059, %v1074
        %v1090 = vadd.f32 %v1060, %v1075
        %1091 = vst [vmem:[%s274] sm:$0xff] %v1076
        %1092 = vst [vmem:[%s274 + $0x8] sm:$0xff] %v1077
        %1093 = vst [vmem:[%s274 + $0x10] sm:$0xff] %v1078
        %1094 = vst [vmem:[%s274 + $0x18] sm:$0xff] %v1079
        %1095 = vst [vmem:[%s274 + $0x20] sm:$0xff] %v1080
        %1096 = vst [vmem:[%s274 + $0x28] sm:$0xff] %v1081
        %1097 = vst [vmem:[%s274 + $0x30] sm:$0xff] %v1082
        %1098 = vst [vmem:[%s274 + $0x38] sm:$0xff] %v1083
        %1099 = vst [vmem:[%s274 + $0x40] sm:$0xff] %v1084
        %1100 = vst [vmem:[%s274 + $0x48] sm:$0xff] %v1085
        %1101 = vst [vmem:[%s274 + $0x50] sm:$0xff] %v1086
        %1102 = vst [vmem:[%s274 + $0x58] sm:$0xff] %v1087
        %1103 = vst [vmem:[%s274 + $0x60] sm:$0xff] %v1088
        %1104 = vst [vmem:[%s274 + $0x68] sm:$0xff] %v1089
        %1105 = vst [vmem:[%s274 + $0x70] sm:$0xff] %v1090
        %vm1106 = vcmask 7168
        %v1107 = vsel %vm1106, %v550, %v835
        %v1108 = vsel %vm1106, %v565, %v850
        %v1109 = vsel %vm1106, %v580, %v865
        %v1110 = vsel %vm1106, %v595, %v880
        %v1111 = vsel %vm1106, %v610, %v895
        %v1112 = vsel %vm1106, %v625, %v910
        %v1113 = vsel %vm1106, %v640, %v925
        %v1114 = vsel %vm1106, %v655, %v940
        %v1115 = vsel %vm1106, %v670, %v955
        %v1116 = vsel %vm1106, %v685, %v970
        %v1117 = vsel %vm1106, %v700, %v985
        %v1118 = vsel %vm1106, %v715, %v1000
        %v1119 = vsel %vm1106, %v730, %v1015
        %v1120 = vsel %vm1106, %v745, %v1030
        %v1121 = vsel %vm1106, %v760, %v1045
        %vm1122 = vcmask 15360
        %1123 = vst.msk [vmem:[%s289] sm:$0xff] %vm1122, %v1107
        %1124 = vst.msk [vmem:[%s289 + $0x8] sm:$0xff] %vm1122, %v1108
        %1125 = vst.msk [vmem:[%s289 + $0x10] sm:$0xff] %vm1122, %v1109
        %1126 = vst.msk [vmem:[%s289 + $0x18] sm:$0xff] %vm1122, %v1110
        %1127 = vst.msk [vmem:[%s289 + $0x20] sm:$0xff] %vm1122, %v1111
        %1128 = vst.msk [vmem:[%s289 + $0x28] sm:$0xff] %vm1122, %v1112
        %1129 = vst.msk [vmem:[%s289 + $0x30] sm:$0xff] %vm1122, %v1113
        %1130 = vst.msk [vmem:[%s289 + $0x38] sm:$0xff] %vm1122, %v1114
        %1131 = vst.msk [vmem:[%s289 + $0x40] sm:$0xff] %vm1122, %v1115
        %1132 = vst.msk [vmem:[%s289 + $0x48] sm:$0xff] %vm1122, %v1116
        %1133 = vst.msk [vmem:[%s289 + $0x50] sm:$0xff] %vm1122, %v1117
        %1134 = vst.msk [vmem:[%s289 + $0x58] sm:$0xff] %vm1122, %v1118
        %1135 = vst.msk [vmem:[%s289 + $0x60] sm:$0xff] %vm1122, %v1119
        %1136 = vst.msk [vmem:[%s289 + $0x68] sm:$0xff] %vm1122, %v1120
        %1137 = vst.msk [vmem:[%s289 + $0x70] sm:$0xff] %vm1122, %v1121
        %s1138 = sand.u32 %s106, 1
        %s1139 = scalar_lea.sflag [#allocation4], %s1138
        %s1140 = sand.u32 %s106, 1
        %s1141 = smul.addr %s1140, 120
        %s1142 = scalar_lea.vmem [#allocation8], %s1141
        %s1143 = smul.u32 15, %s25
        %p1144 = scmp.lt.s32.totalorder %s1143, 29
        %s1145 = scalar_select %p1144, %s1143, 29
        %s1146 = smul.addr %s1145, 8
        %s1147 = scalar_lea.vmem %s4, %s1146
        // Predicated region
        $region45: #{tpu_custom_call.1} parent=31 // pred_check
          %p1148 = pneg %p116
        $region46: #{tpu_custom_call.1} parent=31 // pred_check_branch
          %1150 = sbr.rel (%p1148) target = $region48
        $region47: #{tpu_custom_call.1} parent=31 // pred_region
          %s1151 = smul.u32 15, %s25
          %1153 = vsyncadd %s1139, 0
          %s1154 = smul.addr %s1151, 8
          %s1155 = scalar_lea.hbm %s3, %s1154
          %s1156 = sshll.u32 %s1142, 4
          %s1157 = int_to_ptr.vmem [resolvable:$true] %s1156
          %s1158 = sshll.u32 %s1155, 4
          %s1159 = int_to_ptr.hbm [resolvable:$true] %s1158
          %1164 = dma.vmem_to_hbm [thread:$0]  %s1157, 1920, %s1159, %s1139, 128, 128, 8
        $region48: #{tpu_custom_call.1} parent=31 // pred_fallthru
          _
        // Predicated region
        $region49: #{tpu_custom_call.1} parent=31 // pred_check
          %p1165 = pneg %p142
        $region50: #{tpu_custom_call.1} parent=31 // pred_check_branch
          %1167 = sbr.rel (%p1165) target = $region52
        $region51: #{tpu_custom_call.1} parent=31 // pred_region
          %s1168 = smul.u32 15, %s25
        $region52: #{tpu_custom_call.1} parent=31 // pred_fallthru
          _
      $region32: #{tpu_custom_call.1} parent=5 // pred_fallthru
        _
      %p1169 = scmp.le.s32.totalorder 2, %s20
      // Predicated region
      $region53: #{tpu_custom_call.1} parent=5 // pred_check
        %p1170 = pneg %p1169
      $region54: #{tpu_custom_call.1} parent=5 // pred_check_branch
        %1172 = sbr.rel (%p1170) target = $region56
      $region55: #{tpu_custom_call.1} parent=5 // pred_region
        %s1173 = ssub.s32 %s20, 2
        // Predicated region
        $region57: #{tpu_custom_call.1} parent=55 // pred_check
          %p1174 = pneg %p122
        $region58: #{tpu_custom_call.1} parent=55 // pred_check_branch
          %1176 = sbr.rel (%p1174) target = $region60
        $region59: #{tpu_custom_call.1} parent=55 // pred_region
          %s1177 = sand.u32 %s107, 1
          %s1178 = scalar_lea.sflag [#allocation4], %s1177
          %s1179 = sand.u32 %s107, 1
          %s1180 = smul.addr %s1179, 120
          %s1181 = scalar_lea.vmem [#allocation8], %s1180
          %1183 = dma.done %s1178, 1920
        $region60: #{tpu_custom_call.1} parent=55 // pred_fallthru
          _
        // Predicated region
        $region61: #{tpu_custom_call.1} parent=55 // pred_check
          %p1184 = pneg %p148
        $region62: #{tpu_custom_call.1} parent=55 // pred_check_branch
          %1186 = sbr.rel (%p1184) target = $region64
        $region63: #{tpu_custom_call.1} parent=55 // pred_region
          %s1187 = smul.u32 15, %s26
          %p1188 = scmp.lt.s32.totalorder %s1187, 29
          %s1189 = scalar_select %p1188, %s1187, 29
          %s1190 = smul.addr %s1189, 8
          %s1191 = scalar_lea.vmem %s4, %s1190
        $region64: #{tpu_custom_call.1} parent=55 // pred_fallthru
          _
      $region56: #{tpu_custom_call.1} parent=5 // pred_fallthru
        _
    $region6: #{tpu_custom_call.1} parent=1 // loop_footer
      %s24 = sadd.s32 1, %s20
    $region7: #{tpu_custom_call.1} parent=1 // loop_footer_branch
      %19 = sbr.rel target = $region3
    $region8: #{tpu_custom_call.1} parent=1 // loop_exit
      _
    %1192 = vsyncpa [#allocation3], 1
    %s1193 = scalar_lea.sflag [#allocation3], 1
    %1194 = vsyncpa %s1193, 1
    %1195 = vsyncpa [#allocation6], 1
    %s1196 = scalar_lea.sflag [#allocation6], 1
    %1197 = vsyncpa %s1196, 1
    %1198 = vsyncpa [#allocation4], 1
    %s1199 = scalar_lea.sflag [#allocation4], 1
    %1200 = vsyncpa %s1199, 1

</llo_original>
